<compile_context>
chip_gen: v5e
topology: v5e:2x2
jax: 0.10.0
libtpu: 0.0.40
codegen_flags: <defaults>
</compile_context>

<pallas_src>
import functools

import jax
import jax.numpy as jnp
from jax.experimental import pallas as pl
from jax.experimental.pallas import tpu as pltpu


def _round_up(x, m):
    return (x + m - 1) // m * m


def _dw_merged_conv_kernel(x_ref, w_ref, b_ref, o_ref, xpad_ref, *,
                           K, stride, pad, x_off, L, L_out, Lt, Ct, C):
    """One (batch, channel-tile) step of the merged depthwise conv.

    x_ref   : (1, Ct, L)      unpadded input rows for this channel tile.
    w_ref   : (C, K)          merged (large + centered small) kernel, BN-scaled.
    b_ref   : (C, 1)          fused BN bias table (large + small branch).
    o_ref   : (1, Ct, L_out)  full-length output rows.
    xpad_ref: (Ct, Lpad)      VMEM scratch: zero-padded input row, x at x_off.
    """
    c = pl.program_id(1)
    Lpad = xpad_ref.shape[1]

    # ---- build the zero-padded input row in VMEM (halo handled in-kernel;
    # x_off is lane-aligned so the big copy is an unmasked store).
    if x_off > 0:
        xpad_ref[:, :x_off] = jnp.zeros((Ct, x_off), xpad_ref.dtype)
    right = Lpad - (x_off + L)
    if right > 0:
        xpad_ref[:, x_off + L:] = jnp.zeros((Ct, right), xpad_ref.dtype)
    xpad_ref[:, x_off:x_off + L] = x_ref[0, :, :]

    # ---- per-channel-tile weights/bias sliced from the resident full tables.
    if Ct == C:
        w = w_ref[...].astype(jnp.float32)                    # (Ct, K)
        bias = b_ref[...].astype(jnp.float32)                 # (Ct, 1)
    else:
        row = pl.multiple_of(c * Ct, Ct)
        w = w_ref[pl.ds(row, Ct), :].astype(jnp.float32)
        bias = b_ref[pl.ds(row, Ct), :].astype(jnp.float32)
    w_cols = [w[:, k:k + 1] for k in range(K)]                # hoisted tap columns

    shift = x_off - pad                                       # scratch read offset

    def compute_chunk(out_start, width):
        base = out_start * stride + shift
        acc = jnp.broadcast_to(bias, (Ct, width))             # init with fused bias
        span = (width - 1) * stride + 1
        for k in range(K):
            if stride == 1:
                win = xpad_ref[:, pl.ds(base + k, width)].astype(jnp.float32)
            else:
                # TODO(synk): strided lane extraction goes through the XLU;
                # restructure the chunking if stride>1 ever becomes hot.
                xw = xpad_ref[:, pl.ds(base + k, span)].astype(jnp.float32)
                win = jax.lax.slice(xw, (0, 0), (Ct, span), (1, stride))
            acc = acc + w_cols[k] * win
        o_ref[0, :, pl.ds(out_start, width)] = acc.astype(o_ref.dtype)

    n_full = L_out // Lt
    tail = L_out - n_full * Lt
    if n_full > 0:
        if n_full <= 2:
            for j in range(n_full):
                compute_chunk(j * Lt, Lt)                     # static, lane-aligned
        else:
            @pl.loop(0, n_full)
            def _(j):
                compute_chunk(pl.multiple_of(j * Lt, Lt), Lt)
    if tail > 0:
        compute_chunk(n_full * Lt, tail)                      # ragged masked store


def reparam_large_kernel_conv(x, w_large, w_small, bn_l, bn_s, *,
                              kernel_size, small_kernel, stride=1, eps=1e-5):
    """x: (B, C, L). w_large: (C, K), w_small: (C, S) depthwise kernels.
    bn_l / bn_s: dicts with gamma, beta, mean, var of shape (C,) (eval mode)."""
    B, C, L = x.shape
    K, S = kernel_size, small_kernel
    # Merged-kernel alignment requires odd (same-parity) kernels, as in ModernTCN.
    assert K % 2 == 1 and S % 2 == 1 and S <= K
    pad = K // 2
    L_out = (L + 2 * pad - K) // stride + 1

    # ---- plain-JAX glue: fuse eval-mode BN, fold small kernel into the large one
    # (exactly the module's get_equivalent_kernel_bias math).
    def fuse(w, bn):
        scale = bn["gamma"] / jnp.sqrt(bn["var"] + eps)
        return w * scale[:, None], bn["beta"] - bn["mean"] * scale

    wl_eff, bias_l = fuse(w_large, bn_l)
    ws_eff, bias_s = fuse(w_small, bn_s)
    off = (K - S) // 2
    w_merged = wl_eff.at[:, off:off + S].add(ws_eff)          # (C, K)
    bias = (bias_l + bias_s)[:, None]                         # (C, 1)

    # ---- channel tile: as large as divides C; keep >= 2 parallel grid steps
    # so both v7x TensorCores get work.
    Ct = C
    for cand in (32, 16, 8):
        if C % cand == 0:
            Ct = cand
            break
    if B * (C // Ct) < 2:
        for cand in (16, 8):
            if C % cand == 0 and C // cand >= 2:
                Ct = cand
                break

    # ---- in-kernel output chunk width (full chunks lane-dense, ragged tail ok)
    Lt = 512

    # Scratch row: x placed at a lane-aligned offset, halo + tail zero-filled.
    x_off = _round_up(pad, 128)
    Lpad = max((L_out - 1) * stride + K + (x_off - pad), x_off + L)

    kernel = functools.partial(
        _dw_merged_conv_kernel,
        K=K, stride=stride, pad=pad, x_off=x_off,
        L=L, L_out=L_out, Lt=Lt, Ct=Ct, C=C)

    itemsize = x.dtype.itemsize
    x_blk = Ct * L * itemsize
    out_blk = Ct * L_out * itemsize
    scratch_bytes = Ct * Lpad * itemsize
    tables = C * (K + 1) * itemsize
    need = 2 * x_blk + 2 * out_blk + scratch_bytes + 2 * tables
    vmem_limit = int(min(48 * 1024 * 1024, max(16 * 1024 * 1024, 2 * need)))

    cost = pl.CostEstimate(
        flops=2 * B * C * L_out * K,
        transcendentals=0,
        bytes_accessed=B * C * (L + L_out) * itemsize + C * (K + 1) * itemsize)

    out = pl.pallas_call(
        kernel,
        out_shape=jax.ShapeDtypeStruct((B, C, L_out), x.dtype),
        grid_spec=pltpu.PrefetchScalarGridSpec(
            num_scalar_prefetch=0,
            grid=(B, C // Ct),
            in_specs=[
                # Unpadded input rows for this (batch, channel-tile); the halo
                # is materialized in VMEM scratch inside the kernel.
                pl.BlockSpec((1, Ct, L), lambda b, c: (b, c, 0)),
                # Whole merged-weight / bias tables: constant block index ->
                # fetched once for the entire grid, row-sliced in-kernel.
                pl.BlockSpec((C, K), lambda b, c: (0, 0)),
                pl.BlockSpec((C, 1), lambda b, c: (0, 0)),
            ],
            out_specs=pl.BlockSpec((1, Ct, L_out), lambda b, c: (b, c, 0)),
            scratch_shapes=[pltpu.VMEM((Ct, Lpad), x.dtype)],
        ),
        compiler_params=pltpu.CompilerParams(
            dimension_semantics=("parallel", "parallel"),
            vmem_limit_bytes=vmem_limit),
        cost_estimate=cost,
    )(x, w_merged, bias)
    return out


def _reference(x, w_large, w_small, bn_l, bn_s, *, stride, eps=1e-5):
    """Pure-JAX reference: two depthwise conv+BN branches, summed."""
    C = x.shape[1]

    def branch(w, bn, pad):
        out = jax.lax.conv_general_dilated(
            x, w[:, None, :],                       # (O, I/groups=1, K)
            window_strides=(stride,), padding=[(pad, pad)],
            dimension_numbers=("NCH", "OIH", "NCH"),
            feature_group_count=C)
        scale = bn["gamma"] / jnp.sqrt(bn["var"] + eps)
        shift = bn["beta"] - bn["mean"] * scale
        return out * scale[None, :, None] + shift[None, :, None]

    K = w_large.shape[-1]
    S = w_small.shape[-1]
    return branch(w_large, bn_l, K // 2) + branch(w_small, bn_s, S // 2)


if __name__ == "__main__":
    key = jax.random.PRNGKey(0)

    def make_case(k, B, C, L, K, S):
        ks = jax.random.split(k, 11)
        x = jax.random.normal(ks[0], (B, C, L), dtype=jnp.float32)
        # depthwise Conv1d weights: PyTorch shape (C, 1, K) -> squeeze to (C, K)
        w_large = 0.1 * jax.random.normal(ks[1], (C, K), dtype=jnp.float32)
        w_small = 0.1 * jax.random.normal(ks[2], (C, S), dtype=jnp.float32)

        def bn(k0, k1, k2, k3):
            return dict(
                gamma=1.0 + 0.1 * jax.random.normal(k0, (C,), dtype=jnp.float32),
                beta=0.1 * jax.random.normal(k1, (C,), dtype=jnp.float32),
                mean=0.1 * jax.random.normal(k2, (C,), dtype=jnp.float32),
                var=jnp.abs(jax.random.normal(k3, (C,), dtype=jnp.float32)) + 0.5)

        return x, w_large, w_small, bn(*ks[3:7]), bn(*ks[7:11])

    cases = [
        # (B, C, L, K, S, stride) — small shapes consistent with ModernTCN DWConv
        dict(B=2, C=8,  L=32,   K=13, S=5, stride=1),   # nvars=2, dmodel=4
        dict(B=2, C=16, L=700,  K=13, S=5, stride=1),   # full chunk + ragged tail
        dict(B=1, C=32, L=2600, K=13, S=5, stride=1),   # in-kernel pl.loop chunk path
        dict(B=2, C=8,  L=64,   K=13, S=5, stride=2),   # strided path
    ]
    keys = jax.random.split(key, len(cases))
    for cfg, k in zip(cases, keys):
        x, w_large, w_small, bn_l, bn_s = make_case(
            k, cfg["B"], cfg["C"], cfg["L"], cfg["K"], cfg["S"])
        out = reparam_large_kernel_conv(
            x, w_large, w_small, bn_l, bn_s,
            kernel_size=cfg["K"], small_kernel=cfg["S"], stride=cfg["stride"])
        out = jax.block_until_ready(out)
        ref = _reference(x, w_large, w_small, bn_l, bn_s, stride=cfg["stride"])
        assert out.shape == ref.shape, (cfg, out.shape, ref.shape)
        err = float(jnp.max(jnp.abs(out - ref)))
        assert jnp.allclose(out, ref, atol=2e-4, rtol=2e-4), (cfg, err)

    print("KERNEL_OK")
</pallas_src>

<mosaic_0001>
module attributes {stable_mosaic.version = 11 : i64} {
  func.func @_dw_merged_conv_kernel(%arg0: i32, %arg1: i32, %arg2: memref<1x8x32xf32, #tpu.memory_space<vmem>>, %arg3: memref<8x13xf32, #tpu.memory_space<vmem>>, %arg4: memref<8x1xf32, #tpu.memory_space<vmem>>, %arg5: memref<1x8x32xf32, #tpu.memory_space<vmem>>, %arg6: memref<8x166xf32, #tpu.memory_space<vmem>>) attributes {dimension_semantics = [#tpu.dimension_semantics<parallel>, #tpu.dimension_semantics<parallel>], iteration_bounds = array<i64: 2, 1>, scalar_prefetch = 0 : i64, scratch_operands = 1 : i64, tpu.core_type = #tpu.core_type<tc>, window_params = [{transform_indices = @transform_0, window_bounds = array<i64: 1, 8, 32>}, {pipeline_mode = #tpu.pipeline_mode<synchronous>, transform_indices = @transform_1, window_bounds = array<i64: 8, 13>}, {pipeline_mode = #tpu.pipeline_mode<synchronous>, transform_indices = @transform_2, window_bounds = array<i64: 8, 1>}, {transform_indices = @transform_3, window_bounds = array<i64: 1, 8, 32>}]} {
    %cst = arith.constant 0.000000e+00 : f32
    %0 = vector.broadcast %cst : f32 to vector<8x128xf32>
    %c0 = arith.constant 0 : index
    %c0_0 = arith.constant 0 : index
    %1 = vector.load %arg6[%c0, %c0_0] : memref<8x166xf32, #tpu.memory_space<vmem>>, vector<8x128xf32>
    tpu.vector_store %arg6[%c0, %c0_0], %0 {strides = array<i32>} : memref<8x166xf32, #tpu.memory_space<vmem>>, vector<8x128xf32>,
    %cst_1 = arith.constant 0.000000e+00 : f32
    %2 = vector.broadcast %cst_1 : f32 to vector<8x6xf32>
    %c0_2 = arith.constant 0 : index
    %c160 = arith.constant 160 : index
    %3 = vector.load %arg6[%c0_2, %c160] : memref<8x166xf32, #tpu.memory_space<vmem>>, vector<8x6xf32>
    tpu.vector_store %arg6[%c0_2, %c160], %2 {strides = array<i32>} : memref<8x166xf32, #tpu.memory_space<vmem>>, vector<8x6xf32>,
    %c0_3 = arith.constant 0 : index
    %c0_4 = arith.constant 0 : index
    %c0_5 = arith.constant 0 : index
    %4 = vector.load %arg2[%c0_3, %c0_4, %c0_5] : memref<1x8x32xf32, #tpu.memory_space<vmem>>, vector<1x8x32xf32>
    %5 = vector.shape_cast %4 : vector<1x8x32xf32> to vector<8x32xf32>
    %c0_6 = arith.constant 0 : index
    %c128 = arith.constant 128 : index
    %6 = vector.load %arg6[%c0_6, %c128] : memref<8x166xf32, #tpu.memory_space<vmem>>, vector<8x32xf32>
    tpu.vector_store %arg6[%c0_6, %c128], %5 {strides = array<i32>} : memref<8x166xf32, #tpu.memory_space<vmem>>, vector<8x32xf32>,
    %c0_7 = arith.constant 0 : index
    %c0_8 = arith.constant 0 : index
    %7 = vector.load %arg3[%c0_7, %c0_8] : memref<8x13xf32, #tpu.memory_space<vmem>>, vector<8x13xf32>
    %c0_9 = arith.constant 0 : index
    %c0_10 = arith.constant 0 : index
    %8 = vector.load %arg4[%c0_9, %c0_10] : memref<8x1xf32, #tpu.memory_space<vmem>>, vector<8x1xf32>
    %9 = vector.extract_strided_slice %7 {offsets = [0, 0], sizes = [8, 1], strides = [1, 1]} : vector<8x13xf32> to vector<8x1xf32>
    %10 = vector.extract_strided_slice %7 {offsets = [0, 1], sizes = [8, 1], strides = [1, 1]} : vector<8x13xf32> to vector<8x1xf32>
    %11 = vector.extract_strided_slice %7 {offsets = [0, 2], sizes = [8, 1], strides = [1, 1]} : vector<8x13xf32> to vector<8x1xf32>
    %12 = vector.extract_strided_slice %7 {offsets = [0, 3], sizes = [8, 1], strides = [1, 1]} : vector<8x13xf32> to vector<8x1xf32>
    %13 = vector.extract_strided_slice %7 {offsets = [0, 4], sizes = [8, 1], strides = [1, 1]} : vector<8x13xf32> to vector<8x1xf32>
    %14 = vector.extract_strided_slice %7 {offsets = [0, 5], sizes = [8, 1], strides = [1, 1]} : vector<8x13xf32> to vector<8x1xf32>
    %15 = vector.extract_strided_slice %7 {offsets = [0, 6], sizes = [8, 1], strides = [1, 1]} : vector<8x13xf32> to vector<8x1xf32>
    %16 = vector.extract_strided_slice %7 {offsets = [0, 7], sizes = [8, 1], strides = [1, 1]} : vector<8x13xf32> to vector<8x1xf32>
    %17 = vector.extract_strided_slice %7 {offsets = [0, 8], sizes = [8, 1], strides = [1, 1]} : vector<8x13xf32> to vector<8x1xf32>
    %18 = vector.extract_strided_slice %7 {offsets = [0, 9], sizes = [8, 1], strides = [1, 1]} : vector<8x13xf32> to vector<8x1xf32>
    %19 = vector.extract_strided_slice %7 {offsets = [0, 10], sizes = [8, 1], strides = [1, 1]} : vector<8x13xf32> to vector<8x1xf32>
    %20 = vector.extract_strided_slice %7 {offsets = [0, 11], sizes = [8, 1], strides = [1, 1]} : vector<8x13xf32> to vector<8x1xf32>
    %21 = vector.extract_strided_slice %7 {offsets = [0, 12], sizes = [8, 1], strides = [1, 1]} : vector<8x13xf32> to vector<8x1xf32>
    %22 = vector.shape_cast %8 : vector<8x1xf32> to vector<8x1xf32>
    %23 = vector.broadcast %22 : vector<8x1xf32> to vector<8x32xf32>
    %c0_11 = arith.constant 0 : index
    %c122 = arith.constant 122 : index
    %24 = vector.load %arg6[%c0_11, %c122] : memref<8x166xf32, #tpu.memory_space<vmem>>, vector<8x32xf32>
    %25 = vector.broadcast %9 : vector<8x1xf32> to vector<8x32xf32>
    %26 = arith.mulf %25, %24 : vector<8x32xf32>
    %27 = arith.addf %23, %26 : vector<8x32xf32>
    %c0_12 = arith.constant 0 : index
    %c123 = arith.constant 123 : index
    %28 = vector.load %arg6[%c0_12, %c123] : memref<8x166xf32, #tpu.memory_space<vmem>>, vector<8x32xf32>
    %29 = vector.broadcast %10 : vector<8x1xf32> to vector<8x32xf32>
    %30 = arith.mulf %29, %28 : vector<8x32xf32>
    %31 = arith.addf %27, %30 : vector<8x32xf32>
    %c0_13 = arith.constant 0 : index
    %c124 = arith.constant 124 : index
    %32 = vector.load %arg6[%c0_13, %c124] : memref<8x166xf32, #tpu.memory_space<vmem>>, vector<8x32xf32>
    %33 = vector.broadcast %11 : vector<8x1xf32> to vector<8x32xf32>
    %34 = arith.mulf %33, %32 : vector<8x32xf32>
    %35 = arith.addf %31, %34 : vector<8x32xf32>
    %c0_14 = arith.constant 0 : index
    %c125 = arith.constant 125 : index
    %36 = vector.load %arg6[%c0_14, %c125] : memref<8x166xf32, #tpu.memory_space<vmem>>, vector<8x32xf32>
    %37 = vector.broadcast %12 : vector<8x1xf32> to vector<8x32xf32>
    %38 = arith.mulf %37, %36 : vector<8x32xf32>
    %39 = arith.addf %35, %38 : vector<8x32xf32>
    %c0_15 = arith.constant 0 : index
    %c126 = arith.constant 126 : index
    %40 = vector.load %arg6[%c0_15, %c126] : memref<8x166xf32, #tpu.memory_space<vmem>>, vector<8x32xf32>
    %41 = vector.broadcast %13 : vector<8x1xf32> to vector<8x32xf32>
    %42 = arith.mulf %41, %40 : vector<8x32xf32>
    %43 = arith.addf %39, %42 : vector<8x32xf32>
    %c0_16 = arith.constant 0 : index
    %c127 = arith.constant 127 : index
    %44 = vector.load %arg6[%c0_16, %c127] : memref<8x166xf32, #tpu.memory_space<vmem>>, vector<8x32xf32>
    %45 = vector.broadcast %14 : vector<8x1xf32> to vector<8x32xf32>
    %46 = arith.mulf %45, %44 : vector<8x32xf32>
    %47 = arith.addf %43, %46 : vector<8x32xf32>
    %c0_17 = arith.constant 0 : index
    %c128_18 = arith.constant 128 : index
    %48 = vector.load %arg6[%c0_17, %c128_18] : memref<8x166xf32, #tpu.memory_space<vmem>>, vector<8x32xf32>
    %49 = vector.broadcast %15 : vector<8x1xf32> to vector<8x32xf32>
    %50 = arith.mulf %49, %48 : vector<8x32xf32>
    %51 = arith.addf %47, %50 : vector<8x32xf32>
    %c0_19 = arith.constant 0 : index
    %c129 = arith.constant 129 : index
    %52 = vector.load %arg6[%c0_19, %c129] : memref<8x166xf32, #tpu.memory_space<vmem>>, vector<8x32xf32>
    %53 = vector.broadcast %16 : vector<8x1xf32> to vector<8x32xf32>
    %54 = arith.mulf %53, %52 : vector<8x32xf32>
    %55 = arith.addf %51, %54 : vector<8x32xf32>
    %c0_20 = arith.constant 0 : index
    %c130 = arith.constant 130 : index
    %56 = vector.load %arg6[%c0_20, %c130] : memref<8x166xf32, #tpu.memory_space<vmem>>, vector<8x32xf32>
    %57 = vector.broadcast %17 : vector<8x1xf32> to vector<8x32xf32>
    %58 = arith.mulf %57, %56 : vector<8x32xf32>
    %59 = arith.addf %55, %58 : vector<8x32xf32>
    %c0_21 = arith.constant 0 : index
    %c131 = arith.constant 131 : index
    %60 = vector.load %arg6[%c0_21, %c131] : memref<8x166xf32, #tpu.memory_space<vmem>>, vector<8x32xf32>
    %61 = vector.broadcast %18 : vector<8x1xf32> to vector<8x32xf32>
    %62 = arith.mulf %61, %60 : vector<8x32xf32>
    %63 = arith.addf %59, %62 : vector<8x32xf32>
    %c0_22 = arith.constant 0 : index
    %c132 = arith.constant 132 : index
    %64 = vector.load %arg6[%c0_22, %c132] : memref<8x166xf32, #tpu.memory_space<vmem>>, vector<8x32xf32>
    %65 = vector.broadcast %19 : vector<8x1xf32> to vector<8x32xf32>
    %66 = arith.mulf %65, %64 : vector<8x32xf32>
    %67 = arith.addf %63, %66 : vector<8x32xf32>
    %c0_23 = arith.constant 0 : index
    %c133 = arith.constant 133 : index
    %68 = vector.load %arg6[%c0_23, %c133] : memref<8x166xf32, #tpu.memory_space<vmem>>, vector<8x32xf32>
    %69 = vector.broadcast %20 : vector<8x1xf32> to vector<8x32xf32>
    %70 = arith.mulf %69, %68 : vector<8x32xf32>
    %71 = arith.addf %67, %70 : vector<8x32xf32>
    %c0_24 = arith.constant 0 : index
    %c134 = arith.constant 134 : index
    %72 = vector.load %arg6[%c0_24, %c134] : memref<8x166xf32, #tpu.memory_space<vmem>>, vector<8x32xf32>
    %73 = vector.broadcast %21 : vector<8x1xf32> to vector<8x32xf32>
    %74 = arith.mulf %73, %72 : vector<8x32xf32>
    %75 = arith.addf %71, %74 : vector<8x32xf32>
    %c0_25 = arith.constant 0 : index
    %c0_26 = arith.constant 0 : index
    %c0_27 = arith.constant 0 : index
    %76 = vector.load %arg5[%c0_25, %c0_26, %c0_27] : memref<1x8x32xf32, #tpu.memory_space<vmem>>, vector<1x8x32xf32>
    %77 = vector.shape_cast %76 : vector<1x8x32xf32> to vector<8x32xf32>
    %78 = vector.shape_cast %75 : vector<8x32xf32> to vector<1x8x32xf32>
    tpu.vector_store %arg5[%c0_25, %c0_26, %c0_27], %78 {strides = array<i32>} : memref<1x8x32xf32, #tpu.memory_space<vmem>>, vector<1x8x32xf32>,
    return
  }
  func.func @transform_0(%arg0: i32, %arg1: i32) -> (i32, i32, i32) {
    %c0_i32 = arith.constant 0 : i32
    %c0_i32_0 = arith.constant 0 : i32
    return %arg0, %arg1, %c0_i32 : i32, i32, i32
  }
  func.func @transform_1(%arg0: i32, %arg1: i32) -> (i32, i32) {
    %c0_i32 = arith.constant 0 : i32
    %c0_i32_0 = arith.constant 0 : i32
    %c0_i32_1 = arith.constant 0 : i32
    return %c0_i32, %c0_i32_0 : i32, i32
  }
  func.func @transform_2(%arg0: i32, %arg1: i32) -> (i32, i32) {
    %c0_i32 = arith.constant 0 : i32
    %c0_i32_0 = arith.constant 0 : i32
    %c0_i32_1 = arith.constant 0 : i32
    return %c0_i32, %c0_i32_0 : i32, i32
  }
  func.func @transform_3(%arg0: i32, %arg1: i32) -> (i32, i32, i32) {
    %c0_i32 = arith.constant 0 : i32
    %c0_i32_0 = arith.constant 0 : i32
    return %arg0, %arg1, %c0_i32 : i32, i32, i32
  }
}

</mosaic_0001>

<llo_original>
// kernel: tpu_custom_call.1
$region0: #{tpu_custom_call.1}
  #allocation0 [shape = 'u32[]', space=smem, size = 0x4, offset = 0x4, fixed_abs, tag = 'smem constant byte address 0x4 - core index']
  #allocation1 [shape = 'u32[72,128]{1,0:T(1,128)}', space=vmem, size = 0x9000, scoped, tag = 'internal scratch']
  #allocation2 [shape = 'f32[8,166]{1,0:T(8,128)}', space=vmem, size = 0x2000, scoped, tag = 'scratch operand']
  %s0 = inlined_call_operand.hbm [shape: f32[2,8,32], index: 0, kind: input, shape index: {}]
  %s1 = inlined_call_operand.vmem [shape: f32[8,13], index: 1, kind: input, shape index: {}]
  %s2 = inlined_call_operand.vmem [shape: f32[8,1], index: 2, kind: input, shape index: {}]
  %s3 = inlined_call_operand.hbm [shape: f32[2,8,32], index: 3, kind: output, shape index: {}]
  %s4 = sld [smem:[#allocation0]]
  $region49: #{tpu_custom_call.1} parent=0
    _
  %s6 = ssub.s32 1, %s4
  %s7 = scalar_select 0, %s6, %s4
  $region1: #{tpu_custom_call.1} parent=0
    #allocation3 [shape = 'u8[8192]{0}', space=vmem, size = 0x2000, scoped, tag = 'input window, operand 0']
    #allocation4 [shape = 's32[2]{0}', space=sflag, size = 0x8, scoped, tag = 'scoped memory for tpu_custom_call.1']
    #allocation5 [shape = 's32[2]{0}', space=sflag, size = 0x8, scoped, tag = 'scoped memory for tpu_custom_call.1']
    #allocation6 [shape = 'u8[8192]{0}', space=vmem, size = 0x2000, scoped, tag = 'output window, operand 0']
    %8 = vsyncpa [#allocation4], 0
    %s9 = scalar_lea.sflag [#allocation4], 1
    %10 = vsyncpa %s9, 0
    %11 = vsyncpa [#allocation5], 0
    %s12 = scalar_lea.sflag [#allocation5], 1
    %13 = vsyncpa %s12, 0
    loop: start=0, step=1, limit=4
    $region2: #{tpu_custom_call.1} parent=1 // loop_pre_header
      _
    $region3: #{tpu_custom_call.1} parent=1 // loop_header
      %s15 = sphi 0, %s19
      %p16 = scmp.ge.s32.totalorder %s15, 4
      %s22 = sphi 0, %s34
      %s23 = sphi 0, %s30
      %s24 = sphi 0, %s22
      %s25 = sphi 0, %s23
      %s26 = sphi 0, %s24
      %s27 = sphi 0, %s25
      %s39 = sphi 0, %s41
      %s42 = sphi 0, %s39
      %s43 = sphi 0, %s42
      %s59 = sphi 0, %s43
      %s63 = sphi 0, %s63
      %s65 = sphi 0, %s63
      %s66 = sphi 0, %s65
      %s80 = sphi 0, %s66
      %s84 = sphi 0, %s84
      %s86 = sphi 0, %s84
      %s87 = sphi 0, %s86
      %s101 = sphi 0, %s87
      %s109 = sphi 0, %s111
      %s112 = sphi 0, %s109
      %s113 = sphi 0, %s112
      %s129 = sphi 0, %s113
    $region4: #{tpu_custom_call.1} parent=1 // loop_header_branch
      %18 = sbr.rel (%p16) target = $region8
    $region5: #{tpu_custom_call.1} parent=1 // loop_body
      %s20 = ssub.s32 %s15, 1
      %s21 = ssub.s32 %s15, 2
      %s28 = sadd.s32 1, %s23
      %p29 = scmp.ge.s32.totalorder %s28, 1
      %s30 = scalar_select %p29, 0, %s28
      %s31 = sadd.s32 1, %s22
      %s32 = scalar_select %p29, %s31, %s22
      %p33 = scmp.ge.s32.totalorder %s32, 2
      %s34 = scalar_select %p33, 0, %s32
      %s35 = ssub.s32 %s22, %s34
      %s36 = ssub.s32 %s23, %s30
      %s37 = sor.u32 %s35, %s36
      %p38 = scmp.eq.s32.totalorder %s37, 0
      %s40 = sadd.s32 %s39, 1
      %s41 = scalar_select %p38, %s39, %s40
      %p44 = pneg %p38
      %p45 = scmp.eq.s32.totalorder %s15, 1
      %p46 = por %p44, %p45
      %p47 = scmp.ne.s32.totalorder %s39, %s42
      %p48 = scmp.eq.s32.totalorder %s15, 0
      %p49 = por %p47, %p48
      %p50 = scmp.ne.s32.totalorder %s39, %s42
      %p51 = scmp.eq.s32.totalorder %s20, 1
      %p52 = por %p50, %p51
      %p53 = scmp.ne.s32.totalorder %s42, %s43
      %p54 = scmp.eq.s32.totalorder %s20, 0
      %p55 = por %p53, %p54
      %p56 = scmp.ne.s32.totalorder %s42, %s43
      %p57 = scmp.eq.s32.totalorder %s21, 1
      %p58 = por %p56, %p57
      %p60 = scmp.ne.s32.totalorder %s43, %s59
      %p61 = scmp.eq.s32.totalorder %s21, 0
      %p62 = por %p60, %p61
      %s64 = sadd.s32 %s63, 1
      %p67 = scmp.eq.s32.totalorder %s15, 1
      %p68 = scmp.ne.s32.totalorder %s63, %s65
      %p69 = scmp.eq.s32.totalorder %s15, 0
      %p70 = por %p68, %p69
      %p71 = scmp.ne.s32.totalorder %s63, %s65
      %p72 = scmp.eq.s32.totalorder %s20, 1
      %p73 = por %p71, %p72
      %p74 = scmp.ne.s32.totalorder %s65, %s66
      %p75 = scmp.eq.s32.totalorder %s20, 0
      %p76 = por %p74, %p75
      %p77 = scmp.ne.s32.totalorder %s65, %s66
      %p78 = scmp.eq.s32.totalorder %s21, 1
      %p79 = por %p77, %p78
      %p81 = scmp.ne.s32.totalorder %s66, %s80
      %p82 = scmp.eq.s32.totalorder %s21, 0
      %p83 = por %p81, %p82
      %s85 = sadd.s32 %s84, 1
      %p88 = scmp.eq.s32.totalorder %s15, 1
      %p89 = scmp.ne.s32.totalorder %s84, %s86
      %p90 = scmp.eq.s32.totalorder %s15, 0
      %p91 = por %p89, %p90
      %p92 = scmp.ne.s32.totalorder %s84, %s86
      %p93 = scmp.eq.s32.totalorder %s20, 1
      %p94 = por %p92, %p93
      %p95 = scmp.ne.s32.totalorder %s86, %s87
      %p96 = scmp.eq.s32.totalorder %s20, 0
      %p97 = por %p95, %p96
      %p98 = scmp.ne.s32.totalorder %s86, %s87
      %p99 = scmp.eq.s32.totalorder %s21, 1
      %p100 = por %p98, %p99
      %p102 = scmp.ne.s32.totalorder %s87, %s101
      %p103 = scmp.eq.s32.totalorder %s21, 0
      %p104 = por %p102, %p103
      %s105 = ssub.s32 %s22, %s34
      %s106 = ssub.s32 %s23, %s30
      %s107 = sor.u32 %s105, %s106
      %p108 = scmp.eq.s32.totalorder %s107, 0
      %s110 = sadd.s32 %s109, 1
      %s111 = scalar_select %p108, %s109, %s110
      %p114 = pneg %p108
      %p115 = scmp.eq.s32.totalorder %s15, 1
      %p116 = por %p114, %p115
      %p117 = scmp.ne.s32.totalorder %s109, %s112
      %p118 = scmp.eq.s32.totalorder %s15, 0
      %p119 = por %p117, %p118
      %p120 = scmp.ne.s32.totalorder %s109, %s112
      %p121 = scmp.eq.s32.totalorder %s20, 1
      %p122 = por %p120, %p121
      %p123 = scmp.ne.s32.totalorder %s112, %s113
      %p124 = scmp.eq.s32.totalorder %s20, 0
      %p125 = por %p123, %p124
      %p126 = scmp.ne.s32.totalorder %s112, %s113
      %p127 = scmp.eq.s32.totalorder %s21, 1
      %p128 = por %p126, %p127
      %p130 = scmp.ne.s32.totalorder %s113, %s129
      %p131 = scmp.eq.s32.totalorder %s21, 0
      %p132 = por %p130, %p131
      %p133 = scmp.le.s32.totalorder 1, %s15
      %p134 = scmp.lt.s32.totalorder %s15, 3
      %p135 = pnand %p133, %p134
      %p136 = pneg %p135
      // Predicated region
      $region9: #{tpu_custom_call.1} parent=5 // pred_check
        _
      $region10: #{tpu_custom_call.1} parent=5 // pred_check_branch
        %138 = sbr.rel (%p135) target = $region12
      $region11: #{tpu_custom_call.1} parent=5 // pred_region
        %s139 = ssub.s32 %s15, 1
        // Predicated region
        $region13: #{tpu_custom_call.1} parent=11 // pred_check
          %p140 = pneg %p76
        $region14: #{tpu_custom_call.1} parent=11 // pred_check_branch
          %142 = sbr.rel (%p140) target = $region16
        $region15: #{tpu_custom_call.1} parent=11 // pred_region
          _
        $region16: #{tpu_custom_call.1} parent=11 // pred_fallthru
          _
        // Predicated region
        $region17: #{tpu_custom_call.1} parent=11 // pred_check
          %p143 = pneg %p97
        $region18: #{tpu_custom_call.1} parent=11 // pred_check_branch
          %145 = sbr.rel (%p143) target = $region20
        $region19: #{tpu_custom_call.1} parent=11 // pred_region
          _
        $region20: #{tpu_custom_call.1} parent=11 // pred_fallthru
          _
      $region12: #{tpu_custom_call.1} parent=5 // pred_fallthru
        _
      %p146 = scmp.lt.s32.totalorder %s15, 2
      // Predicated region
      $region21: #{tpu_custom_call.1} parent=5 // pred_check
        %p147 = pneg %p146
      $region22: #{tpu_custom_call.1} parent=5 // pred_check_branch
        %149 = sbr.rel (%p147) target = $region24
      $region23: #{tpu_custom_call.1} parent=5 // pred_region
        // Predicated region
        $region25: #{tpu_custom_call.1} parent=23 // pred_check
          %p150 = pneg %p49
        $region26: #{tpu_custom_call.1} parent=23 // pred_check_branch
          %152 = sbr.rel (%p150) target = $region28
        $region27: #{tpu_custom_call.1} parent=23 // pred_region
          %s153 = sand.u32 %s39, 1
          %s154 = scalar_lea.sflag [#allocation4], %s153
          %s155 = sand.u32 %s39, 1
          %s156 = smul.addr %s155, 8
          %s157 = scalar_lea.vmem [#allocation3], %s156
          %159 = vsyncadd %s154, 0
          %s160 = sadd.s32 %s23, %s22
          %s161 = smul.addr %s160, 8
          %s162 = scalar_lea.hbm %s0, %s161
          %s164 = sshll.u32 %s162, 4
          %s165 = int_to_ptr.hbm [resolvable:$true] %s164
          %s166 = sshll.u32 %s157, 4
          %s167 = int_to_ptr.vmem [resolvable:$true] %s166
          %169 = dma.hbm_to_vmem [thread:$0]  %s165, 128, %s167, %s154
        $region28: #{tpu_custom_call.1} parent=23 // pred_fallthru
          _
      $region24: #{tpu_custom_call.1} parent=5 // pred_fallthru
        _
      %p170 = scmp.le.s32.totalorder 1, %s15
      %p171 = scmp.lt.s32.totalorder %s15, 3
      %p172 = pnand %p170, %p171
      %p173 = pneg %p172
      // Predicated region
      $region29: #{tpu_custom_call.1} parent=5 // pred_check
        _
      $region30: #{tpu_custom_call.1} parent=5 // pred_check_branch
        %175 = sbr.rel (%p172) target = $region32
      $region31: #{tpu_custom_call.1} parent=5 // pred_region
        %s176 = ssub.s32 %s15, 1
        %s177 = sand.u32 %s42, 1
        %s178 = scalar_lea.sflag [#allocation4], %s177
        %s179 = sand.u32 %s42, 1
        %s180 = smul.addr %s179, 8
        %s181 = scalar_lea.vmem [#allocation3], %s180
        // Predicated region
        $region33: #{tpu_custom_call.1} parent=31 // pred_check
          %p182 = pneg %p55
        $region34: #{tpu_custom_call.1} parent=31 // pred_check_branch
          %184 = sbr.rel (%p182) target = $region36
        $region35: #{tpu_custom_call.1} parent=31 // pred_region
          %186 = dma.done %s178, 128
        $region36: #{tpu_custom_call.1} parent=31 // pred_fallthru
          _
        %s187 = sand.u32 %s42, 1
        %s188 = scalar_lea.sflag [#allocation4], %s187
        %s189 = sand.u32 %s42, 1
        %s190 = smul.addr %s189, 8
        %s191 = scalar_lea.vmem [#allocation3], %s190
        %p192 = pneg %p55
        %p193 = pneg %p52
        %p194 = pneg %p76
        %p195 = pneg %p73
        %p196 = pneg %p97
        %p197 = pneg %p94
        %p198 = pneg %p125
        %p199 = pneg %p122
        %s200 = sand.u32 %s112, 1
        %s201 = scalar_lea.sflag [#allocation5], %s200
        %s202 = sand.u32 %s112, 1
        %s203 = smul.addr %s202, 8
        %s204 = scalar_lea.vmem [#allocation6], %s203
        %205 = vst [vmem:[#allocation2] sm:$0xff] 0.0
        %vm206 = vcmask 310528
        %207 = vst.msk [vmem:[#allocation2 + $0x8] sm:$0xff] %vm206, 0.0
        %v208 = vld [vmem:[%s181] sm:$0xff]
        %vm209 = vcmask 261120
        %210 = vst.msk [vmem:[#allocation2 + $0x8] sm:$0xff] %vm209, %v208
        %v211 = vld [vmem:[%s1] sm:$0xff]
        %v212 = vld [vmem:[%s2] sm:$0xff]
        %214 = vset.pattern.permute.xlu0 0
        %215 = vperm.xlu0 %214, %v212
        %v216 = vpop.permute.xlu0 %215
        %v218 = vld [vmem:[#allocation2] sm:$0xff]
        %v219 = vld [vmem:[#allocation2 + $0x8] sm:$0xff]
        %221 = vset.pattern.permute.xlu0 0
        %222 = vperm.xlu0 %221, %v211
        %v223 = vpop.permute.xlu0 %222
        %v225 = vmul.f32 %v223, %v218
        %v226 = vmul.f32 %v223, %v219
        %v227 = vadd.f32 %v216, %v225
        %v228 = vadd.f32 %v216, %v226
        %229 = vset.pattern.permute.xlu0 1
        %230 = vperm.xlu0 %229, %v211
        %v231 = vpop.permute.xlu0 %230
        %v233 = vmul.f32 %v231, %v218
        %v234 = vmul.f32 %v231, %v219
        %237 = vrot.lane.b32.xlu0 %v233, 127
        %v238 = vpop.permute.xlu0 %237
        %239 = vrot.lane.b32.xlu0 %v234, 127
        %v240 = vpop.permute.xlu0 %239
        %vm241 = vcmask 1039360
        %v242 = vsel %vm241, %v238, %v240
        %v245 = vadd.f32 %v227, %v242
        %v246 = vadd.f32 %v228, %v240
        %247 = vset.pattern.permute.xlu0 2
        %248 = vperm.xlu0 %247, %v211
        %v249 = vpop.permute.xlu0 %248
        %v251 = vmul.f32 %v249, %v218
        %v252 = vmul.f32 %v249, %v219
        %255 = vrot.lane.b32.xlu0 %v251, 126
        %v256 = vpop.permute.xlu0 %255
        %257 = vrot.lane.b32.xlu0 %v252, 126
        %v258 = vpop.permute.xlu0 %257
        %vm259 = vcmask 1031168
        %v260 = vsel %vm259, %v256, %v258
        %v263 = vadd.f32 %v245, %v260
        %v264 = vadd.f32 %v246, %v258
        %265 = vset.pattern.permute.xlu0 3
        %266 = vperm.xlu0 %265, %v211
        %v267 = vpop.permute.xlu0 %266
        %v269 = vmul.f32 %v267, %v218
        %v270 = vmul.f32 %v267, %v219
        %273 = vrot.lane.b32.xlu0 %v269, 125
        %v274 = vpop.permute.xlu0 %273
        %275 = vrot.lane.b32.xlu0 %v270, 125
        %v276 = vpop.permute.xlu0 %275
        %vm277 = vcmask 1022976
        %v278 = vsel %vm277, %v274, %v276
        %v281 = vadd.f32 %v263, %v278
        %v282 = vadd.f32 %v264, %v276
        %283 = vset.pattern.permute.xlu0 4
        %284 = vperm.xlu0 %283, %v211
        %v285 = vpop.permute.xlu0 %284
        %v287 = vmul.f32 %v285, %v218
        %v288 = vmul.f32 %v285, %v219
        %291 = vrot.lane.b32.xlu0 %v287, 124
        %v292 = vpop.permute.xlu0 %291
        %293 = vrot.lane.b32.xlu0 %v288, 124
        %v294 = vpop.permute.xlu0 %293
        %vm295 = vcmask 1014784
        %v296 = vsel %vm295, %v292, %v294
        %v299 = vadd.f32 %v281, %v296
        %v300 = vadd.f32 %v282, %v294
        %301 = vset.pattern.permute.xlu0 5
        %302 = vperm.xlu0 %301, %v211
        %v303 = vpop.permute.xlu0 %302
        %v305 = vmul.f32 %v303, %v218
        %v306 = vmul.f32 %v303, %v219
        %309 = vrot.lane.b32.xlu0 %v305, 123
        %v310 = vpop.permute.xlu0 %309
        %311 = vrot.lane.b32.xlu0 %v306, 123
        %v312 = vpop.permute.xlu0 %311
        %vm313 = vcmask 1006592
        %v314 = vsel %vm313, %v310, %v312
        %v317 = vadd.f32 %v299, %v314
        %v318 = vadd.f32 %v300, %v312
        %319 = vset.pattern.permute.xlu0 6
        %320 = vperm.xlu0 %319, %v211
        %v321 = vpop.permute.xlu0 %320
        %v323 = vmul.f32 %v321, %v219
        %325 = vrot.lane.b32.xlu0 %v323, 122
        %v326 = vpop.permute.xlu0 %325
        %v328 = vadd.f32 %v317, %v326
        %v329 = vadd.f32 %v318, %v326
        %330 = vset.pattern.permute.xlu0 7
        %331 = vperm.xlu0 %330, %v211
        %v332 = vpop.permute.xlu0 %331
        %v334 = vmul.f32 %v332, %v219
        %336 = vrot.lane.b32.xlu0 %v334, 121
        %v337 = vpop.permute.xlu0 %336
        %v339 = vadd.f32 %v328, %v337
        %v340 = vadd.f32 %v329, %v337
        %341 = vset.pattern.permute.xlu0 8
        %342 = vperm.xlu0 %341, %v211
        %v343 = vpop.permute.xlu0 %342
        %v345 = vmul.f32 %v343, %v219
        %347 = vrot.lane.b32.xlu0 %v345, 120
        %v348 = vpop.permute.xlu0 %347
        %v350 = vadd.f32 %v339, %v348
        %v351 = vadd.f32 %v340, %v348
        %352 = vset.pattern.permute.xlu0 9
        %353 = vperm.xlu0 %352, %v211
        %v354 = vpop.permute.xlu0 %353
        %v356 = vmul.f32 %v354, %v219
        %358 = vrot.lane.b32.xlu0 %v356, 119
        %v359 = vpop.permute.xlu0 %358
        %v361 = vadd.f32 %v350, %v359
        %v362 = vadd.f32 %v351, %v359
        %363 = vset.pattern.permute.xlu0 10
        %364 = vperm.xlu0 %363, %v211
        %v365 = vpop.permute.xlu0 %364
        %v367 = vmul.f32 %v365, %v219
        %369 = vrot.lane.b32.xlu0 %v367, 118
        %v370 = vpop.permute.xlu0 %369
        %v372 = vadd.f32 %v361, %v370
        %v373 = vadd.f32 %v362, %v370
        %374 = vset.pattern.permute.xlu0 11
        %375 = vperm.xlu0 %374, %v211
        %v376 = vpop.permute.xlu0 %375
        %v378 = vmul.f32 %v376, %v219
        %380 = vrot.lane.b32.xlu0 %v378, 117
        %v381 = vpop.permute.xlu0 %380
        %v383 = vadd.f32 %v372, %v381
        %v384 = vadd.f32 %v373, %v381
        %385 = vset.pattern.permute.xlu0 12
        %386 = vperm.xlu0 %385, %v211
        %v387 = vpop.permute.xlu0 %386
        %v389 = vmul.f32 %v387, %v219
        %391 = vrot.lane.b32.xlu0 %v389, 116
        %v392 = vpop.permute.xlu0 %391
        %v394 = vadd.f32 %v383, %v392
        %v395 = vadd.f32 %v384, %v392
        %398 = vrot.lane.b32.xlu0 %v394, 6
        %v399 = vpop.permute.xlu0 %398
        %400 = vrot.lane.b32.xlu0 %v395, 6
        %v401 = vpop.permute.xlu0 %400
        %vm402 = vcmask 48128
        %v403 = vsel %vm402, %v399, %v401
        %405 = vst.msk [vmem:[%s204] sm:$0xff] %vm209, %v403
        %s406 = sand.u32 %s112, 1
        %s407 = scalar_lea.sflag [#allocation5], %s406
        %s408 = sand.u32 %s112, 1
        %s409 = smul.addr %s408, 8
        %s410 = scalar_lea.vmem [#allocation6], %s409
        // Predicated region
        $region37: #{tpu_custom_call.1} parent=31 // pred_check
          %p411 = pneg %p122
        $region38: #{tpu_custom_call.1} parent=31 // pred_check_branch
          %413 = sbr.rel (%p411) target = $region40
        $region39: #{tpu_custom_call.1} parent=31 // pred_region
          %415 = vsyncadd %s407, 0
          %s416 = sadd.s32 %s25, %s24
          %s417 = smul.addr %s416, 8
          %s418 = scalar_lea.hbm %s3, %s417
          %s420 = sshll.u32 %s410, 4
          %s421 = int_to_ptr.vmem [resolvable:$true] %s420
          %s422 = sshll.u32 %s418, 4
          %s423 = int_to_ptr.hbm [resolvable:$true] %s422
          %425 = dma.vmem_to_hbm [thread:$0]  %s421, 128, %s423, %s407
        $region40: #{tpu_custom_call.1} parent=31 // pred_fallthru
          _
      $region32: #{tpu_custom_call.1} parent=5 // pred_fallthru
        _
      %p426 = scmp.le.s32.totalorder 2, %s15
      // Predicated region
      $region41: #{tpu_custom_call.1} parent=5 // pred_check
        %p427 = pneg %p426
      $region42: #{tpu_custom_call.1} parent=5 // pred_check_branch
        %429 = sbr.rel (%p427) target = $region44
      $region43: #{tpu_custom_call.1} parent=5 // pred_region
        %s430 = ssub.s32 %s15, 2
        // Predicated region
        $region45: #{tpu_custom_call.1} parent=43 // pred_check
          %p431 = pneg %p128
        $region46: #{tpu_custom_call.1} parent=43 // pred_check_branch
          %433 = sbr.rel (%p431) target = $region48
        $region47: #{tpu_custom_call.1} parent=43 // pred_region
          %s434 = sand.u32 %s113, 1
          %s435 = scalar_lea.sflag [#allocation5], %s434
          %s436 = sand.u32 %s113, 1
          %s437 = smul.addr %s436, 8
          %s438 = scalar_lea.vmem [#allocation6], %s437
          %440 = dma.done %s435, 128
        $region48: #{tpu_custom_call.1} parent=43 // pred_fallthru
          _
      $region44: #{tpu_custom_call.1} parent=5 // pred_fallthru
        _
    $region6: #{tpu_custom_call.1} parent=1 // loop_footer
      %s19 = sadd.s32 1, %s15
    $region7: #{tpu_custom_call.1} parent=1 // loop_footer_branch
      %14 = sbr.rel target = $region3
    $region8: #{tpu_custom_call.1} parent=1 // loop_exit
      _
    %441 = vsyncpa [#allocation4], 1
    %s442 = scalar_lea.sflag [#allocation4], 1
    %443 = vsyncpa %s442, 1
    %444 = vsyncpa [#allocation5], 1
    %s445 = scalar_lea.sflag [#allocation5], 1
    %446 = vsyncpa %s445, 1

</llo_original>
